<compile_context>
chip_gen: v7x
topology: tpu7x:2x2x1
jax: 0.10.0
libtpu: 0.0.40
codegen_flags: <defaults>
</compile_context>

<pallas_src>
import math

import jax
import jax.numpy as jnp
from jax.experimental import pallas as pl
from jax.experimental.pallas import tpu as pltpu


def _round_up(a, m):
    return ((a + m - 1) // m) * m


def _binary_pos_emb_kernel(x_ref, shifts_ref, w2_ref, o_ref):
    # x_ref     : (TM, P)              int32  -- P consecutive flattened positions / row
    # shifts_ref: (1, P*n_bits)        int32  -- grid-invariant: shifts[0, b*P + q] = b
    # w2_ref    : (P*n_bits, P*d_pad)  f32    -- grid-invariant block-diagonal bit table
    # o_ref     : (TM, P*d_pad)        f32    -- P packed embeddings per lane-dense row
    x = x_ref[...]
    pack = x.shape[1]
    n_bits = shifts_ref.shape[1] // pack
    # Lane-replicate x n_bits times, then a single shift + and:
    #   bits[r, b*P + q] = bit b of x[r, q]
    # (one pass each over (TM, P*n_bits); no serial where-chain).
    xe = jnp.tile(x, (1, n_bits))
    bits = ((xe >> shifts_ref[...]) & 1).astype(jnp.float32)
    o_ref[...] = jnp.dot(bits, w2_ref[...], preferred_element_type=jnp.float32)


def binary_position_embedding(x, weight, n_bits, *, block_rows=8192):
    """x: int array of any shape; weight: (n_bits+1, d_model) table (row 0 == 0).

    Returns (x.size, d_model) float32, matching the torch forward.
    """
    d_model = weight.shape[1]
    w = weight[:n_bits].astype(jnp.float32)          # bit b -> row b; row n_bits never read

    # Pack P positions per lane-dense output row.
    if d_model <= 128 and 128 % d_model == 0:
        pack = 128 // d_model
        d_pad = d_model
    else:
        # Fallback: keep output stores full-lane by zero-padding the feature dim.
        pack = 1
        d_pad = _round_up(d_model, 128)
        w = jnp.pad(w, ((0, 0), (0, d_pad - d_model)))

    # Block-diagonal weights: w2[b*P + q, q*d_pad + k] = w[b, k].
    eye = jnp.eye(pack, dtype=jnp.float32)
    w2 = (eye[None, :, :, None] * w[:, None, None, :]).reshape(
        n_bits * pack, pack * d_pad)
    # Grid-invariant per-lane shift amounts: shifts[0, b*P + q] = b.
    shifts = jnp.repeat(jnp.arange(n_bits, dtype=jnp.int32), pack).reshape(
        1, n_bits * pack)

    x_flat = x.reshape(-1).astype(jnp.int32)
    n = x_flat.shape[0]
    rows = pl.cdiv(n, pack)
    tm = min(block_rows, _round_up(rows, 8))          # sublane-aligned row tile
    rows_pad = _round_up(rows, tm)
    n_pad = rows_pad * pack
    # Padded positions are 0 -> zero bit mask -> zero rows; sliced off below.
    x_packed = jnp.pad(x_flat, (0, n_pad - n)).reshape(rows_pad, pack)

    out_packed = pl.pallas_call(
        _binary_pos_emb_kernel,
        out_shape=jax.ShapeDtypeStruct((rows_pad, pack * d_pad), jnp.float32),
        grid=(rows_pad // tm,),
        in_specs=[
            pl.BlockSpec((tm, pack), lambda i: (i, 0)),
            pl.BlockSpec((1, n_bits * pack), lambda i: (0, 0)),
            pl.BlockSpec((n_bits * pack, pack * d_pad), lambda i: (0, 0)),
        ],
        out_specs=pl.BlockSpec((tm, pack * d_pad), lambda i: (i, 0)),
        compiler_params=pltpu.CompilerParams(
            dimension_semantics=("parallel",),
            # ~20-25 MiB peak at TM=8192 incl. the lane-padded x buffers; raise
            # the scoped limit so v5e (16 MiB default) also takes the big tile.
            vmem_limit_bytes=40 * 1024 * 1024,
        ),
    )(x_packed, shifts, w2)

    # (rows_pad, P*d_pad) -> (rows_pad*P, d_pad) is the contiguous row-major view.
    out = out_packed.reshape(n_pad, d_pad)[:n]
    if d_pad != d_model:
        out = out[:, :d_model]
    return out


def init_binary_position_embedding(key, n_positions, d_model):
    """Mirrors the module __init__: N(0,1) rows, L2-normalized along dim=1, row 0 zeroed."""
    n_bits = math.ceil(math.log2(n_positions))
    w = jax.random.normal(key, (n_bits + 1, d_model), dtype=jnp.float32)
    w = w / jnp.linalg.norm(w, axis=1, keepdims=True)
    w = w.at[0].set(0.0)
    return w, n_bits


if __name__ == "__main__":
    key = jax.random.PRNGKey(0)
    k_w, k_x, k_x2 = jax.random.split(key, 3)

    n_positions, d_model = 1000, 32          # -> n_bits = 10
    weight, n_bits = init_binary_position_embedding(k_w, n_positions, d_model)

    def reference(xv):
        xf = xv.reshape(-1)
        b = (xf[:, None] >> jnp.arange(n_bits, dtype=jnp.int32)[None, :]) & 1
        return b.astype(jnp.float32) @ weight[:n_bits]

    # Small position tensor consistent with the module: (batch=2, seq=8).
    x = jax.random.randint(k_x, (2, 8), 0, n_positions, dtype=jnp.int32)
    out = jax.block_until_ready(binary_position_embedding(x, weight, n_bits))
    ref = reference(x)
    assert out.shape == (x.size, d_model), out.shape
    assert out.dtype == jnp.float32
    assert jnp.allclose(out, ref, atol=1e-5), float(jnp.max(jnp.abs(out - ref)))

    # Also exercise the tiled / padded path (grid > 1, ragged N) with a tiny tile.
    x2 = jax.random.randint(k_x2, (2, 100), 0, n_positions, dtype=jnp.int32)
    out2 = jax.block_until_ready(
        binary_position_embedding(x2, weight, n_bits, block_rows=8))
    ref2 = reference(x2)
    assert out2.shape == (x2.size, d_model), out2.shape
    assert jnp.allclose(out2, ref2, atol=1e-5), float(jnp.max(jnp.abs(out2 - ref2)))

    print("KERNEL_OK")
</pallas_src>

<mosaic_0001>
module attributes {stable_mosaic.version = 11 : i64} {
  func.func @_binary_pos_emb_kernel(%arg0: i32, %arg1: memref<8x4xi32, #tpu.memory_space<vmem>>, %arg2: memref<1x40xi32, #tpu.memory_space<vmem>>, %arg3: memref<40x128xf32, #tpu.memory_space<vmem>>, %arg4: memref<8x128xf32, #tpu.memory_space<vmem>>) attributes {dimension_semantics = [#tpu.dimension_semantics<parallel>], iteration_bounds = array<i64: 1>, scalar_prefetch = 0 : i64, scratch_operands = 0 : i64, tpu.core_type = #tpu.core_type<tc>, window_params = [{transform_indices = @transform_0, window_bounds = array<i64: 8, 4>}, {pipeline_mode = #tpu.pipeline_mode<synchronous>, transform_indices = @transform_1, window_bounds = array<i64: 1, 40>}, {pipeline_mode = #tpu.pipeline_mode<synchronous>, transform_indices = @transform_2, window_bounds = array<i64: 40, 128>}, {transform_indices = @transform_3, window_bounds = array<i64: 8, 128>}]} {
    %c0 = arith.constant 0 : index
    %c0_0 = arith.constant 0 : index
    %0 = vector.load %arg1[%c0, %c0_0] : memref<8x4xi32, #tpu.memory_space<vmem>>, vector<8x4xi32>
    %1 = tpu.concatenate %0, %0, %0, %0, %0, %0, %0, %0, %0, %0 in 1 : vector<8x4xi32>, vector<8x4xi32>, vector<8x4xi32>, vector<8x4xi32>, vector<8x4xi32>, vector<8x4xi32>, vector<8x4xi32>, vector<8x4xi32>, vector<8x4xi32>, vector<8x4xi32> -> vector<8x40xi32>
    %c0_1 = arith.constant 0 : index
    %c0_2 = arith.constant 0 : index
    %2 = vector.load %arg2[%c0_1, %c0_2] : memref<1x40xi32, #tpu.memory_space<vmem>>, vector<1x40xi32>
    %3 = vector.broadcast %2 : vector<1x40xi32> to vector<8x40xi32>
    %4 = arith.shrsi %1, %3 : vector<8x40xi32>
    %c1_i32 = arith.constant 1 : i32
    %5 = vector.broadcast %c1_i32 : i32 to vector<8x40xi32>
    %6 = arith.andi %4, %5 : vector<8x40xi32>
    %7 = arith.sitofp %6 : vector<8x40xi32> to vector<8x40xf32>
    %c0_3 = arith.constant 0 : index
    %c0_4 = arith.constant 0 : index
    %8 = vector.load %arg3[%c0_3, %c0_4] : memref<40x128xf32, #tpu.memory_space<vmem>>, vector<40x128xf32>
    %cst = arith.constant dense<0.000000e+00> : vector<8x128xf32>
    %9 = tpu.matmul %7, %8, %cst {dimension_numbers = #tpu.dot_dimension_numbers<[1], [0], [0], [1], [0, 0, 1, 1], [], []>} : vector<8x40xf32>, vector<40x128xf32>, vector<8x128xf32> -> vector<8x128xf32>
    %c0_5 = arith.constant 0 : index
    %c0_6 = arith.constant 0 : index
    %10 = vector.load %arg4[%c0_5, %c0_6] : memref<8x128xf32, #tpu.memory_space<vmem>>, vector<8x128xf32>
    tpu.vector_store %arg4[%c0_5, %c0_6], %9 {strides = array<i32>} : memref<8x128xf32, #tpu.memory_space<vmem>>, vector<8x128xf32>,
    return
  }
  func.func @transform_0(%arg0: i32) -> (i32, i32) {
    %c0_i32 = arith.constant 0 : i32
    %c0_i32_0 = arith.constant 0 : i32
    return %arg0, %c0_i32 : i32, i32
  }
  func.func @transform_1(%arg0: i32) -> (i32, i32) {
    %c0_i32 = arith.constant 0 : i32
    %c0_i32_0 = arith.constant 0 : i32
    %c0_i32_1 = arith.constant 0 : i32
    return %c0_i32, %c0_i32_0 : i32, i32
  }
  func.func @transform_2(%arg0: i32) -> (i32, i32) {
    %c0_i32 = arith.constant 0 : i32
    %c0_i32_0 = arith.constant 0 : i32
    %c0_i32_1 = arith.constant 0 : i32
    return %c0_i32, %c0_i32_0 : i32, i32
  }
  func.func @transform_3(%arg0: i32) -> (i32, i32) {
    %c0_i32 = arith.constant 0 : i32
    %c0_i32_0 = arith.constant 0 : i32
    return %arg0, %c0_i32 : i32, i32
  }
}

</mosaic_0001>

<llo_original>
// kernel: tpu_custom_call.1
$region0: #{tpu_custom_call.1}
  #allocation0 [shape = 'u32[]', space=smem, size = 0x4, offset = 0x4, fixed_abs, tag = 'smem constant byte address 0x4 - core index']
  #allocation1 [shape = 'u32[144,128]{1,0:T(1,128)}', space=vmem, size = 0x12000, scoped, tag = 'internal scratch']
  %s0 = inlined_call_operand.vmem [shape: s32[8,4], index: 0, kind: input, shape index: {}]
  %s1 = inlined_call_operand.vmem [shape: s32[1,40], index: 1, kind: input, shape index: {}]
  %s2 = inlined_call_operand.hbm [shape: f32[40,128], index: 2, kind: input, shape index: {}]
  %s3 = inlined_call_operand.hbm [shape: f32[8,128], index: 3, kind: output, shape index: {}]
  %s4 = sld [smem:[#allocation0]]
  $region26: #{tpu_custom_call.1} parent=0
    _
  %s6 = ssub.s32 1, %s4
  %s7 = scalar_select 0, %s6, %s4
  $region1: #{tpu_custom_call.1} parent=0
    #allocation2 [shape = 'u8[20480]{0}', space=vmem, size = 0x5000, scoped, tag = 'input window, operand 2, single buffered']
    #allocation3 [shape = 's32[1]{0}', space=sflag, size = 0x4, scoped, tag = 'scoped memory for tpu_custom_call.1']
    #allocation4 [shape = 's32[1]{0}', space=sflag, size = 0x4, scoped, tag = 'scoped memory for tpu_custom_call.1']
    #allocation5 [shape = 'u8[4096]{0}', space=vmem, size = 0x1000, scoped, tag = 'output window, operand 0, single buffered']
    %8 = vsyncpa [#allocation3], 0
    %9 = vsyncpa [#allocation4], 0
    // Predicated region
    $region2: #{tpu_custom_call.1} parent=1 // pred_check
      _
    $region3: #{tpu_custom_call.1} parent=1 // pred_check_branch
      %11 = sbr.rel (0) target = $region5
    $region4: #{tpu_custom_call.1} parent=1 // pred_region
      _
    $region5: #{tpu_custom_call.1} parent=1 // pred_fallthru
      _
    // Predicated region
    $region6: #{tpu_custom_call.1} parent=1 // pred_check
      _
    $region7: #{tpu_custom_call.1} parent=1 // pred_check_branch
      %13 = sbr.rel (0) target = $region9
    $region8: #{tpu_custom_call.1} parent=1 // pred_region
      _
    $region9: #{tpu_custom_call.1} parent=1 // pred_fallthru
      _
    // Predicated region
    $region10: #{tpu_custom_call.1} parent=1 // pred_check
      _
    $region11: #{tpu_custom_call.1} parent=1 // pred_check_branch
      %15 = sbr.rel (0) target = $region13
    $region12: #{tpu_custom_call.1} parent=1 // pred_region
      %s17 = ssub.s32 640, 640
      %18 = vsyncadd [#allocation3], %s17
      %s19 = sshll.u32 [#allocation2], 4
      %s20 = int_to_ptr.vmem [resolvable:$true] %s19
      %25 = dma.hbm_to_vmem [thread:$0]  %s2, 640, %s20, [#allocation3], 128, 128, 8
    $region13: #{tpu_custom_call.1} parent=1 // pred_fallthru
      _
    // Predicated region
    $region14: #{tpu_custom_call.1} parent=1 // pred_check
      _
    $region15: #{tpu_custom_call.1} parent=1 // pred_check_branch
      %27 = sbr.rel (0) target = $region17
    $region16: #{tpu_custom_call.1} parent=1 // pred_region
      %28 = dma.done [#allocation3], 640
    $region17: #{tpu_custom_call.1} parent=1 // pred_fallthru
      _
    %v29 = vld [vmem:[%s0] sm:$0xff]
    %30 = vrot.lane.b32.xlu0 %v29, 4
    %v31 = vpop.permute.xlu0 %30
    %32 = vrot.lane.b32.xlu0 %v29, 8
    %v33 = vpop.permute.xlu0 %32
    %34 = vrot.lane.b32.xlu0 %v29, 12
    %v35 = vpop.permute.xlu0 %34
    %36 = vrot.lane.b32.xlu0 %v29, 16
    %v37 = vpop.permute.xlu0 %36
    %38 = vrot.lane.b32.xlu0 %v29, 20
    %v39 = vpop.permute.xlu0 %38
    %40 = vrot.lane.b32.xlu0 %v29, 24
    %v41 = vpop.permute.xlu0 %40
    %42 = vrot.lane.b32.xlu0 %v29, 28
    %v43 = vpop.permute.xlu0 %42
    %44 = vrot.lane.b32.xlu0 %v29, 32
    %v45 = vpop.permute.xlu0 %44
    %46 = vrot.lane.b32.xlu0 %v29, 36
    %v47 = vpop.permute.xlu0 %46
    %vm48 = vcmask 31744
    %v49 = vsel %vm48, %v29, %v31
    %vm50 = vcmask 64512
    %v51 = vsel %vm50, %v49, %v33
    %vm52 = vcmask 97280
    %v53 = vsel %vm52, %v51, %v35
    %vm54 = vcmask 130048
    %v55 = vsel %vm54, %v53, %v37
    %vm56 = vcmask 162816
    %v57 = vsel %vm56, %v55, %v39
    %vm58 = vcmask 195584
    %v59 = vsel %vm58, %v57, %v41
    %vm60 = vcmask 228352
    %v61 = vsel %vm60, %v59, %v43
    %vm62 = vcmask 261120
    %v63 = vsel %vm62, %v61, %v45
    %vm64 = vcmask 293888
    %v65 = vsel %vm64, %v63, %v47
    %v66 = vld [vmem:[%s1] sm:$0x1]
    %v67 = vlaneseq
    %v68 = vshrl.u32 %v67, 7
    %v69 = vsub.s32 0, %v68
    %v70 = vrot.slane %v66, %v69
    %v71 = vshra.s32 %v65, %v70
    %v72 = vand.u32 %v71, 1
    %v73 = vcvt.s32.f32 %v72
    %v74 = vld [vmem:[#allocation2] sm:$0xff]
    %v75 = vld [vmem:[#allocation2 + $0x8] sm:$0xff]
    %v76 = vld [vmem:[#allocation2 + $0x10] sm:$0xff]
    %v77 = vld [vmem:[#allocation2 + $0x18] sm:$0xff]
    %v78 = vld [vmem:[#allocation2 + $0x20] sm:$0xff]
    %vm79 = vcmask 326656
    %v81 = vsel %vm79, %v73, 0
    %83 = vmatprep.subr.mxu0 0.0
    %84 = vmatpush1.msra.mxu0 %v74
    %85 = vmatprep.subr.mxu0 0.0
    %86 = vmatpush1.msra.mxu0 %v75
    %87 = vmatprep.subr.mxu0 0.0
    %88 = vmatpush1.msra.mxu0 %v76
    %89 = vmatprep.subr.mxu0 0.0
    %90 = vmatpush1.msra.mxu0 %v77
    %91 = vmatprep.subr.mxu0 0.0
    %92 = vmatpush1.msra.mxu0 %v78
    %93 = vmatprep.subr.mxu0 0.0
    %94 = vmatpush1.msra.mxu0 0.0
    %95 = vmatprep.subr.mxu0 0.0
    %96 = vmatpush1.msra.mxu0 0.0
    %97 = vmatprep.subr.mxu0 0.0
    %98 = vmatpush1.msra.mxu0 0.0
    %99 = vmatprep.subr.mxu0 0.0
    %100 = vmatpush1.msra.mxu0 0.0
    %101 = vmatprep.subr.mxu0 0.0
    %102 = vmatpush1.msra.mxu0 0.0
    %103 = vmatprep.subr.mxu0 0.0
    %104 = vmatpush1.msra.mxu0 0.0
    %105 = vmatprep.subr.mxu0 0.0
    %106 = vmatpush1.msra.mxu0 0.0
    %107 = vmatprep.subr.mxu0 0.0
    %108 = vmatpush1.msra.mxu0 0.0
    %109 = vmatprep.subr.mxu0 0.0
    %110 = vmatpush1.msra.mxu0 0.0
    %111 = vmatprep.subr.mxu0 0.0
    %112 = vmatpush1.msra.mxu0 0.0
    %113 = vmatprep.subr.mxu0 0.0
    %114 = vmatpush1.msra.mxu0 0.0
    %115 = vmatprep.subr.mxu0 0.0
    %116 = vmatpush1.msra.mxu0 0.0
    %117 = vmatprep.subr.mxu0 0.0
    %118 = vmatpush1.msra.mxu0 0.0
    %119 = vmatprep.subr.mxu0 0.0
    %120 = vmatpush1.msra.mxu0 0.0
    %121 = vmatprep.subr.mxu0 0.0
    %122 = vmatpush1.msra.mxu0 0.0
    %123 = vmatprep.subr.mxu0 0.0
    %124 = vmatpush1.msra.mxu0 0.0
    %125 = vmatprep.subr.mxu0 0.0
    %126 = vmatpush1.msra.mxu0 0.0
    %127 = vmatprep.subr.mxu0 0.0
    %128 = vmatpush1.msra.mxu0 0.0
    %129 = vmatprep.subr.mxu0 0.0
    %130 = vmatpush1.msra.mxu0 0.0
    %131 = vmatprep.subr.mxu0 0.0
    %132 = vmatpush1.msra.mxu0 0.0
    %133 = vmatprep.subr.mxu0 0.0
    %134 = vmatpush1.msra.mxu0 0.0
    %135 = vmatprep.subr.mxu0 0.0
    %136 = vmatpush1.msra.mxu0 0.0
    %137 = vmatprep.subr.mxu0 0.0
    %138 = vmatpush1.msra.mxu0 0.0
    %139 = vmatprep.subr.mxu0 0.0
    %140 = vmatpush1.msra.mxu0 0.0
    %141 = vmatprep.subr.mxu0 0.0
    %142 = vmatpush1.msra.mxu0 0.0
    %143 = vmatprep.subr.mxu0 0.0
    %144 = vmatpush1.msra.mxu0 0.0
    %145 = vmatprep.subr.mxu0 0.0
    %146 = vmatpush1.msra.mxu0 0.0
    %147 = vmatprep.mubr.f32.mxu0 0.0
    %148 = vmatmul.mubr.f32.gmra.mrb[0].mxu0 %v81
    %v149 = vpop.f32.mrb[0].mxu0
    %v150 = vadd.f32 0.0, %v149
    %v151 = vpop.f32.mrb[0].mxu0
    %152 = vdwg.mxu0
    %153 = vst [vmem:[#allocation5] sm:$0xff] %v150
    // Predicated region
    $region18: #{tpu_custom_call.1} parent=1 // pred_check
      _
    $region19: #{tpu_custom_call.1} parent=1 // pred_check_branch
      %155 = sbr.rel (0) target = $region21
    $region20: #{tpu_custom_call.1} parent=1 // pred_region
      %s157 = ssub.s32 128, 128
      %158 = vsyncadd [#allocation4], %s157
      %s160 = sshll.u32 [#allocation5], 4
      %s161 = int_to_ptr.vmem [resolvable:$true] %s160
      %163 = dma.vmem_to_hbm [thread:$0]  %s161, 128, %s3, [#allocation4]
    $region21: #{tpu_custom_call.1} parent=1 // pred_fallthru
      _
    // Predicated region
    $region22: #{tpu_custom_call.1} parent=1 // pred_check
      _
    $region23: #{tpu_custom_call.1} parent=1 // pred_check_branch
      %165 = sbr.rel (0) target = $region25
    $region24: #{tpu_custom_call.1} parent=1 // pred_region
      %166 = dma.done [#allocation4], 128
    $region25: #{tpu_custom_call.1} parent=1 // pred_fallthru
      _
    %167 = vsyncpa [#allocation3], 1
    %168 = vsyncpa [#allocation4], 1

</llo_original>
